<compile_context>
chip_gen: v5e
topology: v5e:2x2
jax: 0.10.0
libtpu: 0.0.40
codegen_flags: <defaults>
</compile_context>

<pallas_src>
import math

import jax
import jax.numpy as jnp
from jax.experimental import pallas as pl
from jax.experimental.pallas import tpu as pltpu

jax.config.update("jax_default_matmul_precision", "highest")

_LN_EPS = 1e-6
_GELU_C = 0.7978845608028654  # sqrt(2 / pi)


def _layernorm(x, g, b):
    mu = jnp.mean(x, axis=-1, keepdims=True)
    xc = x - mu
    var = jnp.mean(xc * xc, axis=-1, keepdims=True)
    return xc * jax.lax.rsqrt(var + _LN_EPS) * g + b


# ---------------------------------------------------------------------------
# Kernel 1: fused token embedding + norm_emb (grid over batch).
# ---------------------------------------------------------------------------
def _embed_ln_kernel(tok_ref, emb_ref, g_ref, b_ref, o_ref):
    # tok_ref: (1, 1, S) int32 block   emb_ref: (V, E) resident
    # g_ref/b_ref: (1, E)              o_ref: (1, S, E) block
    V, E = emb_ref.shape
    S = tok_ref.shape[2]
    tok = tok_ref[0]                                                  # (1, S) int32
    onehot_t = (jax.lax.broadcasted_iota(jnp.int32, (V, S), 0) == tok)
    onehot_t = onehot_t.astype(jnp.float32)                           # (V, S)
    # gather-as-matmul on the MXU: (V,S)^T . (V,E) -> (S,E)
    x = jax.lax.dot_general(onehot_t, emb_ref[...],
                            (((0,), (0,)), ((), ())),
                            preferred_element_type=jnp.float32)
    o_ref[0] = _layernorm(x, g_ref[...], b_ref[...])


# ---------------------------------------------------------------------------
# Kernel 2: one fused pre-LN transformer Block (grid over batch).
# ---------------------------------------------------------------------------
def _make_block_kernel(n_head, apply_final_ln):
    def kernel(x_ref, ln1g_ref, ln1b_ref, wq_ref, wk_ref, wv_ref,
               pkt_ref, gat_ref, wp_ref, ln2g_ref, ln2b_ref,
               w1_ref, w2_ref, lnfg_ref, lnfb_ref, o_ref):
        S, E = x_ref.shape[1], x_ref.shape[2]
        hs = E // n_head
        two_r = gat_ref.shape[0]
        scale = 1.0 / math.sqrt(hs)

        x = x_ref[0]                                                  # (S, E)

        # ---------------- attention sub-block (pre-LN) ----------------
        xn = _layernorm(x, ln1g_ref[...], ln1b_ref[...])
        q = jnp.dot(xn, wq_ref[...], preferred_element_type=jnp.float32)
        k = jnp.dot(xn, wk_ref[...], preferred_element_type=jnp.float32)
        v = jnp.dot(xn, wv_ref[...], preferred_element_type=jnp.float32)
        pkt = pkt_ref[...]                                            # (hs, 2R)

        attn_out = jnp.zeros((S, E), dtype=jnp.float32)
        for h in range(n_head):
            lo = h * hs
            qh = q[:, lo:lo + hs]                                     # (S, hs)
            kh = k[:, lo:lo + hs]
            vh = v[:, lo:lo + hs]
            # qh @ kh^T without an explicit transpose.
            att_val = jax.lax.dot_general(
                qh, kh, (((1,), (1,)), ((), ())),
                preferred_element_type=jnp.float32)                   # (S, S)
            # relative-position logits: qh @ pos_emb_k^T, then the static
            # gather expressed as a one-hot contraction over the 2R axis.
            rel = jnp.dot(qh, pkt, preferred_element_type=jnp.float32)  # (S, 2R)
            att_pos = jnp.zeros((S, S), dtype=jnp.float32)
            for p in range(two_r):
                att_pos = att_pos + rel[:, p:p + 1] * gat_ref[p]
            z = (att_val + att_pos) * scale
            z = z - jnp.max(z, axis=-1, keepdims=True)
            ez = jnp.exp(z)
            att = ez / jnp.sum(ez, axis=-1, keepdims=True)            # (S, S)
            yh = jnp.dot(att, vh, preferred_element_type=jnp.float32)  # (S, hs)
            # fold the output projection into the head loop (no concat).
            attn_out = attn_out + jnp.dot(yh, wp_ref[lo:lo + hs, :],
                                          preferred_element_type=jnp.float32)
        x = x + attn_out

        # ---------------- MLP sub-block (pre-LN) ----------------
        xn2 = _layernorm(x, ln2g_ref[...], ln2b_ref[...])
        hdn = jnp.dot(xn2, w1_ref[...], preferred_element_type=jnp.float32)
        # TODO(synk): tanh-approx GELU; PyTorch nn.GELU() default is the exact
        # erf form (difference is ~1e-3 relative).
        hdn = 0.5 * hdn * (1.0 + jnp.tanh(_GELU_C * (hdn + 0.044715 * hdn * hdn * hdn)))
        x = x + jnp.dot(hdn, w2_ref[...], preferred_element_type=jnp.float32)

        if apply_final_ln:                                            # fused norm_final
            x = _layernorm(x, lnfg_ref[...], lnfb_ref[...])
        o_ref[0] = x

    return kernel


# ---------------------------------------------------------------------------
# Parameter init (PyTorch nn.Linear layout) + one-time kernel-layout prep.
# ---------------------------------------------------------------------------
def init_bert_params(key, cfg):
    V, E = cfg["vocab_size"], cfg["embed_size"]
    H, R, L = cfg["n_head"], cfg["pos_emb_radius"], cfg["n_layer"]
    hs = E // H
    keys = iter(jax.random.split(key, 64))

    def nrm(shape, std=0.02):
        return jax.random.normal(next(keys), shape, dtype=jnp.float32) * std

    params = {
        "tok_emb": nrm((V, E)),
        "norm_emb_g": jnp.ones((E,), jnp.float32),
        "norm_emb_b": jnp.zeros((E,), jnp.float32),
        "norm_final_g": jnp.ones((E,), jnp.float32),
        "norm_final_b": jnp.zeros((E,), jnp.float32),
        "layers": [],
    }
    proj_std = 0.02 / math.sqrt(2 * L)
    for _ in range(L):
        params["layers"].append({
            "ln1_g": jnp.ones((E,), jnp.float32), "ln1_b": jnp.zeros((E,), jnp.float32),
            "wq": nrm((E, E)), "wk": nrm((E, E)), "wv": nrm((E, E)),
            "pos_emb_k": nrm((2 * R, hs)),
            "wproj": nrm((E, E), proj_std),
            "ln2_g": jnp.ones((E,), jnp.float32), "ln2_b": jnp.zeros((E,), jnp.float32),
            "w1": nrm((4 * E, E)), "w2": nrm((E, 4 * E)),
        })
    return params


def prepare_params(params, cfg, context_size):
    """One-time prep: pre-transpose weights, build the static rel-pos one-hot."""
    E, R, S = cfg["embed_size"], cfg["pos_emb_radius"], context_size
    ar = jnp.arange(S)
    idx = jnp.clip(ar[None, :] - ar[:, None], -R, R - 1) % (2 * R)    # (S, S)
    gat = jnp.transpose(jax.nn.one_hot(idx, 2 * R, dtype=jnp.float32), (2, 0, 1))  # (2R,S,S)

    prep = {
        "tok_emb": params["tok_emb"],
        "norm_emb_g": params["norm_emb_g"].reshape(1, E),
        "norm_emb_b": params["norm_emb_b"].reshape(1, E),
        "norm_final_g": params["norm_final_g"].reshape(1, E),
        "norm_final_b": params["norm_final_b"].reshape(1, E),
        "gat": gat,
        "layers": [],
    }
    for lp in params["layers"]:
        prep["layers"].append({
            "ln1_g": lp["ln1_g"].reshape(1, E), "ln1_b": lp["ln1_b"].reshape(1, E),
            "wq_t": lp["wq"].T, "wk_t": lp["wk"].T, "wv_t": lp["wv"].T,
            "pos_emb_k_t": lp["pos_emb_k"].T,          # (hs, 2R)
            "wproj_t": lp["wproj"].T,
            "ln2_g": lp["ln2_g"].reshape(1, E), "ln2_b": lp["ln2_b"].reshape(1, E),
            "w1_t": lp["w1"].T,                        # (E, 4E)
            "w2_t": lp["w2"].T,                        # (4E, E)
        })
    return prep


# ---------------------------------------------------------------------------
# Forward pass: one embed+LN call, then one fused-Block call per layer.
# ---------------------------------------------------------------------------
def bert_forward(tokens, prep, cfg):
    B, S = tokens.shape
    V, E = cfg["vocab_size"], cfg["embed_size"]
    H, R, L = cfg["n_head"], cfg["pos_emb_radius"], cfg["n_layer"]
    hs, two_r = E // H, 2 * cfg["pos_emb_radius"]

    cp = pltpu.CompilerParams(dimension_semantics=("parallel",))

    # --- embedding + norm_emb ---
    tokens3 = tokens.reshape(B, 1, S)
    x = pl.pallas_call(
        _embed_ln_kernel,
        out_shape=jax.ShapeDtypeStruct((B, S, E), jnp.float32),
        grid=(B,),
        in_specs=[
            pl.BlockSpec((1, 1, S), lambda b: (b, 0, 0)),   # tokens (per-batch block)
            pl.BlockSpec((V, E), lambda b: (0, 0)),         # embedding table, resident
            pl.BlockSpec((1, E), lambda b: (0, 0)),         # norm_emb gamma
            pl.BlockSpec((1, E), lambda b: (0, 0)),         # norm_emb beta
        ],
        out_specs=pl.BlockSpec((1, S, E), lambda b: (b, 0, 0)),
        compiler_params=cp,
        cost_estimate=pl.CostEstimate(
            flops=2 * B * S * V * E,
            transcendentals=0,
            bytes_accessed=4 * (B * S + V * E + 2 * E + B * S * E)),
    )(tokens3, prep["tok_emb"], prep["norm_emb_g"], prep["norm_emb_b"])

    # --- transformer blocks (norm_final fused into the last one) ---
    flops_blk = B * (6 * S * E * E
                     + H * (4 * S * S * hs + 2 * S * two_r * hs
                            + 2 * S * S * two_r + 2 * S * hs * E)
                     + 16 * S * E * E)
    trans_blk = B * (H * S * S + 4 * S * E + 3 * S)
    bytes_blk = 4 * (2 * B * S * E + 4 * E * E + hs * two_r + two_r * S * S
                     + 8 * E * E + 8 * E)

    for li, lp in enumerate(prep["layers"]):
        kern = _make_block_kernel(H, apply_final_ln=(li == L - 1))
        x = pl.pallas_call(
            kern,
            out_shape=jax.ShapeDtypeStruct((B, S, E), jnp.float32),
            grid=(B,),
            in_specs=[
                pl.BlockSpec((1, S, E), lambda b: (b, 0, 0)),      # x (per-batch block)
                pl.BlockSpec((1, E), lambda b: (0, 0)),            # ln1 gamma
                pl.BlockSpec((1, E), lambda b: (0, 0)),            # ln1 beta
                pl.BlockSpec((E, E), lambda b: (0, 0)),            # Wq^T
                pl.BlockSpec((E, E), lambda b: (0, 0)),            # Wk^T
                pl.BlockSpec((E, E), lambda b: (0, 0)),            # Wv^T
                pl.BlockSpec((hs, two_r), lambda b: (0, 0)),       # pos_emb_k^T
                pl.BlockSpec((two_r, S, S), lambda b: (0, 0, 0)),  # static gather one-hot
                pl.BlockSpec((E, E), lambda b: (0, 0)),            # Wproj^T
                pl.BlockSpec((1, E), lambda b: (0, 0)),            # ln2 gamma
                pl.BlockSpec((1, E), lambda b: (0, 0)),            # ln2 beta
                pl.BlockSpec((E, 4 * E), lambda b: (0, 0)),        # W1^T
                pl.BlockSpec((4 * E, E), lambda b: (0, 0)),        # W2^T
                pl.BlockSpec((1, E), lambda b: (0, 0)),            # norm_final gamma
                pl.BlockSpec((1, E), lambda b: (0, 0)),            # norm_final beta
            ],
            out_specs=pl.BlockSpec((1, S, E), lambda b: (b, 0, 0)),
            compiler_params=cp,
            cost_estimate=pl.CostEstimate(flops=flops_blk, transcendentals=trans_blk,
                                          bytes_accessed=bytes_blk),
        )(x, lp["ln1_g"], lp["ln1_b"], lp["wq_t"], lp["wk_t"], lp["wv_t"],
          lp["pos_emb_k_t"], prep["gat"], lp["wproj_t"], lp["ln2_g"], lp["ln2_b"],
          lp["w1_t"], lp["w2_t"], prep["norm_final_g"], prep["norm_final_b"])
    return x


# ---------------------------------------------------------------------------
# Pure-JAX reference mirroring the PyTorch module.
# ---------------------------------------------------------------------------
def bert_reference(tokens, params, cfg):
    E, H, R = cfg["embed_size"], cfg["n_head"], cfg["pos_emb_radius"]
    hs = E // H
    B, S = tokens.shape
    x = params["tok_emb"][tokens]
    x = _layernorm(x, params["norm_emb_g"], params["norm_emb_b"])
    ar = jnp.arange(S)
    idx = jnp.clip(ar[None, :] - ar[:, None], -R, R - 1) % (2 * R)
    for lp in params["layers"]:
        xn = _layernorm(x, lp["ln1_g"], lp["ln1_b"])
        q = (xn @ lp["wq"].T).reshape(B, S, H, hs).transpose(0, 2, 1, 3)
        k = (xn @ lp["wk"].T).reshape(B, S, H, hs).transpose(0, 2, 1, 3)
        v = (xn @ lp["wv"].T).reshape(B, S, H, hs).transpose(0, 2, 1, 3)
        rel = q @ lp["pos_emb_k"].T                                    # (B,H,S,2R)
        att_pos = jnp.take_along_axis(rel, jnp.broadcast_to(idx, (B, H, S, S)), axis=3)
        att_val = q @ jnp.swapaxes(k, -1, -2)
        att = jax.nn.softmax((att_val + att_pos) / math.sqrt(hs), axis=-1)
        y = (att @ v).transpose(0, 2, 1, 3).reshape(B, S, E)
        x = x + y @ lp["wproj"].T
        xn2 = _layernorm(x, lp["ln2_g"], lp["ln2_b"])
        hdn = xn2 @ lp["w1"].T
        hdn = 0.5 * hdn * (1.0 + jnp.tanh(_GELU_C * (hdn + 0.044715 * hdn ** 3)))
        x = x + hdn @ lp["w2"].T
    return _layernorm(x, params["norm_final_g"], params["norm_final_b"])


if __name__ == "__main__":
    cfg = dict(vocab_size=64, embed_size=32, n_head=4, pos_emb_radius=4, n_layer=2)
    B, S = 2, 8

    key = jax.random.PRNGKey(0)
    kp, kt = jax.random.split(key)
    params = init_bert_params(kp, cfg)
    tokens = jax.random.randint(kt, (B, S), 0, cfg["vocab_size"], dtype=jnp.int32)

    prep = prepare_params(params, cfg, S)          # one-time layout prep
    out = bert_forward(tokens, prep, cfg)
    out = jax.block_until_ready(out)

    ref = bert_reference(tokens, params, cfg)
    assert out.shape == (B, S, cfg["embed_size"])
    err = float(jnp.max(jnp.abs(out - ref)))
    assert err < 1e-3, f"max abs error {err}"

    print("KERNEL_OK")
</pallas_src>

<mosaic_0001>
module attributes {stable_mosaic.version = 11 : i64} {
  func.func @_embed_ln_kernel(%arg0: i32, %arg1: memref<1x1x8xi32, #tpu.memory_space<vmem>>, %arg2: memref<64x32xf32, #tpu.memory_space<vmem>>, %arg3: memref<1x32xf32, #tpu.memory_space<vmem>>, %arg4: memref<1x32xf32, #tpu.memory_space<vmem>>, %arg5: memref<1x8x32xf32, #tpu.memory_space<vmem>>) attributes {dimension_semantics = [#tpu.dimension_semantics<parallel>], iteration_bounds = array<i64: 2>, scalar_prefetch = 0 : i64, scratch_operands = 0 : i64, tpu.core_type = #tpu.core_type<tc>, window_params = [{transform_indices = @transform_0, window_bounds = array<i64: 1, 1, 8>}, {pipeline_mode = #tpu.pipeline_mode<synchronous>, transform_indices = @transform_1, window_bounds = array<i64: 64, 32>}, {pipeline_mode = #tpu.pipeline_mode<synchronous>, transform_indices = @transform_2, window_bounds = array<i64: 1, 32>}, {pipeline_mode = #tpu.pipeline_mode<synchronous>, transform_indices = @transform_3, window_bounds = array<i64: 1, 32>}, {transform_indices = @transform_4, window_bounds = array<i64: 1, 8, 32>}]} {
    %c0 = arith.constant 0 : index
    %c0_0 = arith.constant 0 : index
    %c0_1 = arith.constant 0 : index
    %0 = vector.load %arg1[%c0, %c0_0, %c0_1] : memref<1x1x8xi32, #tpu.memory_space<vmem>>, vector<1x1x8xi32>
    %1 = vector.shape_cast %0 : vector<1x1x8xi32> to vector<1x8xi32>
    %2 = tpu.iota {dimensions = array<i32: 0>} : vector<64x8xi32>
    %3 = vector.broadcast %1 : vector<1x8xi32> to vector<64x8xi32>
    %4 = arith.cmpi eq, %2, %3 : vector<64x8xi32>
    %5 = arith.extui %4 : vector<64x8xi1> to vector<64x8xi32>
    %6 = arith.sitofp %5 : vector<64x8xi32> to vector<64x8xf32>
    %c0_2 = arith.constant 0 : index
    %c0_3 = arith.constant 0 : index
    %7 = vector.load %arg2[%c0_2, %c0_3] : memref<64x32xf32, #tpu.memory_space<vmem>>, vector<64x32xf32>
    %cst = arith.constant dense<0.000000e+00> : vector<8x32xf32>
    %8 = tpu.matmul %6, %7, %cst {dimension_numbers = #tpu.dot_dimension_numbers<[0], [0], [1], [1], [0, 1, 1, 1], [], []>, precision = #tpu.contract_precision<fp32>} : vector<64x8xf32>, vector<64x32xf32>, vector<8x32xf32> -> vector<8x32xf32>
    %c0_4 = arith.constant 0 : index
    %c0_5 = arith.constant 0 : index
    %9 = vector.load %arg3[%c0_4, %c0_5] : memref<1x32xf32, #tpu.memory_space<vmem>>, vector<1x32xf32>
    %c0_6 = arith.constant 0 : index
    %c0_7 = arith.constant 0 : index
    %10 = vector.load %arg4[%c0_6, %c0_7] : memref<1x32xf32, #tpu.memory_space<vmem>>, vector<1x32xf32>
    %cst_8 = arith.constant dense<0.000000e+00> : vector<8xf32>
    %11 = vector.multi_reduction <add>, %8, %cst_8 [1] : vector<8x32xf32> to vector<8xf32>
    %12 = vector.shape_cast %11 : vector<8xf32> to vector<8x1xf32>
    %cst_9 = arith.constant 3.200000e+01 : f32
    %13 = vector.broadcast %cst_9 : f32 to vector<8x1xf32>
    %14 = arith.divf %12, %13 : vector<8x1xf32>
    %15 = vector.broadcast %14 : vector<8x1xf32> to vector<8x32xf32>
    %16 = arith.subf %8, %15 : vector<8x32xf32>
    %17 = arith.mulf %16, %16 : vector<8x32xf32>
    %cst_10 = arith.constant dense<0.000000e+00> : vector<8xf32>
    %18 = vector.multi_reduction <add>, %17, %cst_10 [1] : vector<8x32xf32> to vector<8xf32>
    %19 = vector.shape_cast %18 : vector<8xf32> to vector<8x1xf32>
    %cst_11 = arith.constant 3.200000e+01 : f32
    %20 = vector.broadcast %cst_11 : f32 to vector<8x1xf32>
    %21 = arith.divf %19, %20 : vector<8x1xf32>
    %cst_12 = arith.constant 9.99999997E-7 : f32
    %22 = vector.broadcast %cst_12 : f32 to vector<8x1xf32>
    %23 = arith.addf %21, %22 : vector<8x1xf32>
    %24 = math.rsqrt %23 : vector<8x1xf32>
    %25 = vector.broadcast %24 : vector<8x1xf32> to vector<8x32xf32>
    %26 = arith.mulf %16, %25 : vector<8x32xf32>
    %27 = vector.broadcast %9 : vector<1x32xf32> to vector<8x32xf32>
    %28 = arith.mulf %26, %27 : vector<8x32xf32>
    %29 = vector.broadcast %10 : vector<1x32xf32> to vector<8x32xf32>
    %30 = arith.addf %28, %29 : vector<8x32xf32>
    %c0_13 = arith.constant 0 : index
    %c0_14 = arith.constant 0 : index
    %c0_15 = arith.constant 0 : index
    %31 = vector.load %arg5[%c0_13, %c0_14, %c0_15] : memref<1x8x32xf32, #tpu.memory_space<vmem>>, vector<1x8x32xf32>
    %32 = vector.shape_cast %31 : vector<1x8x32xf32> to vector<8x32xf32>
    %33 = vector.shape_cast %30 : vector<8x32xf32> to vector<1x8x32xf32>
    tpu.vector_store %arg5[%c0_13, %c0_14, %c0_15], %33 {strides = array<i32>} : memref<1x8x32xf32, #tpu.memory_space<vmem>>, vector<1x8x32xf32>,
    return
  }
  func.func @transform_0(%arg0: i32) -> (i32, i32, i32) {
    %c0_i32 = arith.constant 0 : i32
    %c0_i32_0 = arith.constant 0 : i32
    %c0_i32_1 = arith.constant 0 : i32
    return %arg0, %c0_i32, %c0_i32_0 : i32, i32, i32
  }
  func.func @transform_1(%arg0: i32) -> (i32, i32) {
    %c0_i32 = arith.constant 0 : i32
    %c0_i32_0 = arith.constant 0 : i32
    %c0_i32_1 = arith.constant 0 : i32
    return %c0_i32, %c0_i32_0 : i32, i32
  }
  func.func @transform_2(%arg0: i32) -> (i32, i32) {
    %c0_i32 = arith.constant 0 : i32
    %c0_i32_0 = arith.constant 0 : i32
    %c0_i32_1 = arith.constant 0 : i32
    return %c0_i32, %c0_i32_0 : i32, i32
  }
  func.func @transform_3(%arg0: i32) -> (i32, i32) {
    %c0_i32 = arith.constant 0 : i32
    %c0_i32_0 = arith.constant 0 : i32
    %c0_i32_1 = arith.constant 0 : i32
    return %c0_i32, %c0_i32_0 : i32, i32
  }
  func.func @transform_4(%arg0: i32) -> (i32, i32, i32) {
    %c0_i32 = arith.constant 0 : i32
    %c0_i32_0 = arith.constant 0 : i32
    %c0_i32_1 = arith.constant 0 : i32
    return %arg0, %c0_i32, %c0_i32_0 : i32, i32, i32
  }
}

</mosaic_0001>

<llo_original>
// kernel: tpu_custom_call.1
$region0: #{tpu_custom_call.1}
  #allocation0 [shape = 'u32[]', space=smem, size = 0x4, offset = 0x4, fixed_abs, tag = 'smem constant byte address 0x4 - core index']
  #allocation1 [shape = 'u32[72,128]{1,0:T(1,128)}', space=vmem, size = 0x9000, scoped, tag = 'internal scratch']
  %s0 = inlined_call_operand.vmem [shape: s32[2,1,8], index: 0, kind: input, shape index: {}]
  %s1 = inlined_call_operand.vmem [shape: f32[64,32], index: 1, kind: input, shape index: {}]
  %s2 = inlined_call_operand.vmem [shape: f32[1,32], index: 2, kind: input, shape index: {}]
  %s3 = inlined_call_operand.vmem [shape: f32[1,32], index: 3, kind: input, shape index: {}]
  %s4 = inlined_call_operand.hbm [shape: f32[2,8,32], index: 4, kind: output, shape index: {}]
  %s5 = sld [smem:[#allocation0]]
  $region49: #{tpu_custom_call.1} parent=0
    _
  %s7 = ssub.s32 1, %s5
  %s8 = scalar_select 0, %s7, %s5
  $region1: #{tpu_custom_call.1} parent=0
    #allocation2 [shape = 'u8[8192]{0}', space=vmem, size = 0x2000, scoped, tag = 'output window, operand 0']
    #allocation3 [shape = 's32[2]{0}', space=sflag, size = 0x8, scoped, tag = 'scoped memory for tpu_custom_call.1']
    %9 = vsyncpa [#allocation3], 0
    %s10 = scalar_lea.sflag [#allocation3], 1
    %11 = vsyncpa %s10, 0
    loop: start=0, step=1, limit=4
    $region2: #{tpu_custom_call.1} parent=1 // loop_pre_header
      _
    $region3: #{tpu_custom_call.1} parent=1 // loop_header
      %s13 = sphi 0, %s17
      %p14 = scmp.ge.s32.totalorder %s13, 4
      %s23 = sphi 0, %s25
      %s26 = sphi 0, %s23
      %s27 = sphi 0, %s26
      %s43 = sphi 0, %s27
      %s47 = sphi 0, %s47
      %s49 = sphi 0, %s47
      %s50 = sphi 0, %s49
      %s64 = sphi 0, %s50
      %s68 = sphi 0, %s68
      %s70 = sphi 0, %s68
      %s71 = sphi 0, %s70
      %s85 = sphi 0, %s71
      %s89 = sphi 0, %s89
      %s91 = sphi 0, %s89
      %s92 = sphi 0, %s91
      %s106 = sphi 0, %s92
      %s112 = sphi 0, %s114
      %s115 = sphi 0, %s112
      %s116 = sphi 0, %s115
      %s132 = sphi 0, %s116
    $region4: #{tpu_custom_call.1} parent=1 // loop_header_branch
      %16 = sbr.rel (%p14) target = $region8
    $region5: #{tpu_custom_call.1} parent=1 // loop_body
      %s18 = ssub.s32 %s13, 1
      %s19 = ssub.s32 %s13, 2
      %s20 = sadd.s32 %s13, 1
      %s21 = ssub.s32 %s13, %s20
      %p22 = scmp.eq.s32.totalorder %s21, 0
      %s24 = sadd.s32 %s23, 1
      %s25 = scalar_select %p22, %s23, %s24
      %p28 = pneg %p22
      %p29 = scmp.eq.s32.totalorder %s13, 1
      %p30 = por %p28, %p29
      %p31 = scmp.ne.s32.totalorder %s23, %s26
      %p32 = scmp.eq.s32.totalorder %s13, 0
      %p33 = por %p31, %p32
      %p34 = scmp.ne.s32.totalorder %s23, %s26
      %p35 = scmp.eq.s32.totalorder %s18, 1
      %p36 = por %p34, %p35
      %p37 = scmp.ne.s32.totalorder %s26, %s27
      %p38 = scmp.eq.s32.totalorder %s18, 0
      %p39 = por %p37, %p38
      %p40 = scmp.ne.s32.totalorder %s26, %s27
      %p41 = scmp.eq.s32.totalorder %s19, 1
      %p42 = por %p40, %p41
      %p44 = scmp.ne.s32.totalorder %s27, %s43
      %p45 = scmp.eq.s32.totalorder %s19, 0
      %p46 = por %p44, %p45
      %s48 = sadd.s32 %s47, 1
      %p51 = scmp.eq.s32.totalorder %s13, 1
      %p52 = scmp.ne.s32.totalorder %s47, %s49
      %p53 = scmp.eq.s32.totalorder %s13, 0
      %p54 = por %p52, %p53
      %p55 = scmp.ne.s32.totalorder %s47, %s49
      %p56 = scmp.eq.s32.totalorder %s18, 1
      %p57 = por %p55, %p56
      %p58 = scmp.ne.s32.totalorder %s49, %s50
      %p59 = scmp.eq.s32.totalorder %s18, 0
      %p60 = por %p58, %p59
      %p61 = scmp.ne.s32.totalorder %s49, %s50
      %p62 = scmp.eq.s32.totalorder %s19, 1
      %p63 = por %p61, %p62
      %p65 = scmp.ne.s32.totalorder %s50, %s64
      %p66 = scmp.eq.s32.totalorder %s19, 0
      %p67 = por %p65, %p66
      %s69 = sadd.s32 %s68, 1
      %p72 = scmp.eq.s32.totalorder %s13, 1
      %p73 = scmp.ne.s32.totalorder %s68, %s70
      %p74 = scmp.eq.s32.totalorder %s13, 0
      %p75 = por %p73, %p74
      %p76 = scmp.ne.s32.totalorder %s68, %s70
      %p77 = scmp.eq.s32.totalorder %s18, 1
      %p78 = por %p76, %p77
      %p79 = scmp.ne.s32.totalorder %s70, %s71
      %p80 = scmp.eq.s32.totalorder %s18, 0
      %p81 = por %p79, %p80
      %p82 = scmp.ne.s32.totalorder %s70, %s71
      %p83 = scmp.eq.s32.totalorder %s19, 1
      %p84 = por %p82, %p83
      %p86 = scmp.ne.s32.totalorder %s71, %s85
      %p87 = scmp.eq.s32.totalorder %s19, 0
      %p88 = por %p86, %p87
      %s90 = sadd.s32 %s89, 1
      %p93 = scmp.eq.s32.totalorder %s13, 1
      %p94 = scmp.ne.s32.totalorder %s89, %s91
      %p95 = scmp.eq.s32.totalorder %s13, 0
      %p96 = por %p94, %p95
      %p97 = scmp.ne.s32.totalorder %s89, %s91
      %p98 = scmp.eq.s32.totalorder %s18, 1
      %p99 = por %p97, %p98
      %p100 = scmp.ne.s32.totalorder %s91, %s92
      %p101 = scmp.eq.s32.totalorder %s18, 0
      %p102 = por %p100, %p101
      %p103 = scmp.ne.s32.totalorder %s91, %s92
      %p104 = scmp.eq.s32.totalorder %s19, 1
      %p105 = por %p103, %p104
      %p107 = scmp.ne.s32.totalorder %s92, %s106
      %p108 = scmp.eq.s32.totalorder %s19, 0
      %p109 = por %p107, %p108
      %s110 = ssub.s32 %s13, %s20
      %p111 = scmp.eq.s32.totalorder %s110, 0
      %s113 = sadd.s32 %s112, 1
      %s114 = scalar_select %p111, %s112, %s113
      %p117 = pneg %p111
      %p118 = scmp.eq.s32.totalorder %s13, 1
      %p119 = por %p117, %p118
      %p120 = scmp.ne.s32.totalorder %s112, %s115
      %p121 = scmp.eq.s32.totalorder %s13, 0
      %p122 = por %p120, %p121
      %p123 = scmp.ne.s32.totalorder %s112, %s115
      %p124 = scmp.eq.s32.totalorder %s18, 1
      %p125 = por %p123, %p124
      %p126 = scmp.ne.s32.totalorder %s115, %s116
      %p127 = scmp.eq.s32.totalorder %s18, 0
      %p128 = por %p126, %p127
      %p129 = scmp.ne.s32.totalorder %s115, %s116
      %p130 = scmp.eq.s32.totalorder %s19, 1
      %p131 = por %p129, %p130
      %p133 = scmp.ne.s32.totalorder %s116, %s132
      %p134 = scmp.eq.s32.totalorder %s19, 0
      %p135 = por %p133, %p134
      %p136 = scmp.le.s32.totalorder 1, %s13
      %p137 = scmp.lt.s32.totalorder %s13, 3
      %p138 = pnand %p136, %p137
      %p139 = pneg %p138
      // Predicated region
      $region9: #{tpu_custom_call.1} parent=5 // pred_check
        _
      $region10: #{tpu_custom_call.1} parent=5 // pred_check_branch
        %141 = sbr.rel (%p138) target = $region12
      $region11: #{tpu_custom_call.1} parent=5 // pred_region
        %s142 = ssub.s32 %s13, 1
        // Predicated region
        $region13: #{tpu_custom_call.1} parent=11 // pred_check
          %p143 = pneg %p60
        $region14: #{tpu_custom_call.1} parent=11 // pred_check_branch
          %145 = sbr.rel (%p143) target = $region16
        $region15: #{tpu_custom_call.1} parent=11 // pred_region
          _
        $region16: #{tpu_custom_call.1} parent=11 // pred_fallthru
          _
        // Predicated region
        $region17: #{tpu_custom_call.1} parent=11 // pred_check
          %p146 = pneg %p81
        $region18: #{tpu_custom_call.1} parent=11 // pred_check_branch
          %148 = sbr.rel (%p146) target = $region20
        $region19: #{tpu_custom_call.1} parent=11 // pred_region
          _
        $region20: #{tpu_custom_call.1} parent=11 // pred_fallthru
          _
        // Predicated region
        $region21: #{tpu_custom_call.1} parent=11 // pred_check
          %p149 = pneg %p102
        $region22: #{tpu_custom_call.1} parent=11 // pred_check_branch
          %151 = sbr.rel (%p149) target = $region24
        $region23: #{tpu_custom_call.1} parent=11 // pred_region
          _
        $region24: #{tpu_custom_call.1} parent=11 // pred_fallthru
          _
      $region12: #{tpu_custom_call.1} parent=5 // pred_fallthru
        _
      %p152 = scmp.lt.s32.totalorder %s13, 2
      // Predicated region
      $region25: #{tpu_custom_call.1} parent=5 // pred_check
        %p153 = pneg %p152
      $region26: #{tpu_custom_call.1} parent=5 // pred_check_branch
        %155 = sbr.rel (%p153) target = $region28
      $region27: #{tpu_custom_call.1} parent=5 // pred_region
        // Predicated region
        $region29: #{tpu_custom_call.1} parent=27 // pred_check
          %p156 = pneg %p33
        $region30: #{tpu_custom_call.1} parent=27 // pred_check_branch
          %158 = sbr.rel (%p156) target = $region32
        $region31: #{tpu_custom_call.1} parent=27 // pred_region
          %p159 = scmp.lt.s32.totalorder %s13, 1
          %s160 = scalar_select %p159, %s13, 1
          %s161 = scalar_lea.vmem %s0, %s160
        $region32: #{tpu_custom_call.1} parent=27 // pred_fallthru
          _
      $region28: #{tpu_custom_call.1} parent=5 // pred_fallthru
        _
      %p162 = scmp.le.s32.totalorder 1, %s13
      %p163 = scmp.lt.s32.totalorder %s13, 3
      %p164 = pnand %p162, %p163
      %p165 = pneg %p164
      // Predicated region
      $region33: #{tpu_custom_call.1} parent=5 // pred_check
        _
      $region34: #{tpu_custom_call.1} parent=5 // pred_check_branch
        %167 = sbr.rel (%p164) target = $region36
      $region35: #{tpu_custom_call.1} parent=5 // pred_region
        %s168 = ssub.s32 %s13, 1
        %p169 = scmp.lt.s32.totalorder %s18, 1
        %s170 = scalar_select %p169, %s18, 1
        %s171 = scalar_lea.vmem %s0, %s170
        %p172 = pneg %p39
        %p173 = pneg %p36
        %p174 = pneg %p60
        %p175 = pneg %p57
        %p176 = pneg %p81
        %p177 = pneg %p78
        %p178 = pneg %p102
        %p179 = pneg %p99
        %p180 = pneg %p128
        %p181 = pneg %p125
        %s182 = sand.u32 %s115, 1
        %s183 = scalar_lea.sflag [#allocation3], %s182
        %s184 = sand.u32 %s115, 1
        %s185 = smul.addr %s184, 8
        %s186 = scalar_lea.vmem [#allocation2], %s185
        %p187 = scmp.lt.s32.totalorder %s18, 1
        %s188 = scalar_select %p187, %s18, 1
        %s189 = scalar_lea.vmem %s0, %s188
        %v190 = vld [vmem:[%s189] sm:$0x1]
        %v191 = vlaneseq
        %v192 = vshrl.u32 %v191, 7
        %v193 = vadd.s32 %v192, 8
        %v194 = vadd.s32 %v192, 16
        %v195 = vadd.s32 %v192, 24
        %v196 = vadd.s32 %v192, 32
        %v197 = vadd.s32 %v192, 40
        %v198 = vadd.s32 %v192, 48
        %v199 = vadd.s32 %v192, 56
        %v200 = vperm.slane %v190, 0
        %vm201 = vcmp.eq.s32.totalorder %v192, %v200
        %vm202 = vcmp.eq.s32.totalorder %v193, %v200
        %vm203 = vcmp.eq.s32.totalorder %v194, %v200
        %vm204 = vcmp.eq.s32.totalorder %v195, %v200
        %vm205 = vcmp.eq.s32.totalorder %v196, %v200
        %vm206 = vcmp.eq.s32.totalorder %v197, %v200
        %vm207 = vcmp.eq.s32.totalorder %v198, %v200
        %vm208 = vcmp.eq.s32.totalorder %v199, %v200
        %v209 = vsel %vm201, 1, 0
        %v210 = vsel %vm202, 1, 0
        %v211 = vsel %vm203, 1, 0
        %v212 = vsel %vm204, 1, 0
        %v213 = vsel %vm205, 1, 0
        %v214 = vsel %vm206, 1, 0
        %v215 = vsel %vm207, 1, 0
        %v216 = vsel %vm208, 1, 0
        %v217 = vcvt.s32.f32 %v209
        %v218 = vcvt.s32.f32 %v210
        %v219 = vcvt.s32.f32 %v211
        %v220 = vcvt.s32.f32 %v212
        %v221 = vcvt.s32.f32 %v213
        %v222 = vcvt.s32.f32 %v214
        %v223 = vcvt.s32.f32 %v215
        %v224 = vcvt.s32.f32 %v216
        %v225 = vld [vmem:[%s1] sm:$0xff]
        %v226 = vld [vmem:[%s1 + $0x8] sm:$0xff]
        %v227 = vld [vmem:[%s1 + $0x10] sm:$0xff]
        %v228 = vld [vmem:[%s1 + $0x18] sm:$0xff]
        %v229 = vld [vmem:[%s1 + $0x20] sm:$0xff]
        %v230 = vld [vmem:[%s1 + $0x28] sm:$0xff]
        %v231 = vld [vmem:[%s1 + $0x30] sm:$0xff]
        %v232 = vld [vmem:[%s1 + $0x38] sm:$0xff]
        %233 = vxpose.xlu0.b32.start [1/16] %v217, 128
        %234 = vxpose.xlu0.b32.cont [2/16] %v218, 128
        %235 = vxpose.xlu0.b32.cont [3/16] %v219, 128
        %236 = vxpose.xlu0.b32.cont [4/16] %v220, 128
        %237 = vxpose.xlu0.b32.cont [5/16] %v221, 128
        %238 = vxpose.xlu0.b32.cont [6/16] %v222, 128
        %239 = vxpose.xlu0.b32.cont [7/16] %v223, 128
        %240 = vxpose.xlu0.b32.cont [8/16] %v224, 128
        %241 = vxpose.xlu0.b32.cont [9/16] 0.0, 128
        %242 = vxpose.xlu0.b32.cont [10/16] 0.0, 128
        %243 = vxpose.xlu0.b32.cont [11/16] 0.0, 128
        %244 = vxpose.xlu0.b32.cont [12/16] 0.0, 128
        %245 = vxpose.xlu0.b32.cont [13/16] 0.0, 128
        %246 = vxpose.xlu0.b32.cont [14/16] 0.0, 128
        %247 = vxpose.xlu0.b32.cont [15/16] 0.0, 128
        %248 = vxpose.xlu0.b32.end [16/16] 0.0, 128
        %v249 = vpop.trf.xlu0
        %v250 = vpop.trf.xlu0
        %v251 = vpop.trf.xlu0
        %v252 = vpop.trf.xlu0
        %v253 = vpop.trf.xlu0
        %v254 = vpop.trf.xlu0
        %v255 = vpop.trf.xlu0
        %v256 = vpop.trf.xlu0
        %v257 = vpop.trf.xlu0
        %v258 = vpop.trf.xlu0
        %v259 = vpop.trf.xlu0
        %v260 = vpop.trf.xlu0
        %v261 = vpop.trf.xlu0
        %v262 = vpop.trf.xlu0
        %v263 = vpop.trf.xlu0
        %v264 = vpop.trf.xlu0
        %vm265 = vcmask 523264
        %v267 = vsel %vm265, %v249, 0
        %269 = vmatpush.msra.mxu0 0.0
        %270 = vmatpush.msra.mxu0 0.0
        %271 = vmatpush.msra.mxu0 0.0
        %272 = vmatpush.msra.mxu0 0.0
        %273 = vmatpush.msra.mxu0 0.0
        %274 = vmatpush.msra.mxu0 0.0
        %275 = vmatpush.msra.mxu0 0.0
        %276 = vmatpush.msra.mxu0 0.0
        %v277 = vand.u32 %v232, 4294901760
        %278 = vmatpush.msra.mxu0 %v277
        %v279 = vand.u32 %v231, 4294901760
        %280 = vmatpush.msra.mxu0 %v279
        %v281 = vand.u32 %v230, 4294901760
        %282 = vmatpush.msra.mxu0 %v281
        %v283 = vand.u32 %v229, 4294901760
        %284 = vmatpush.msra.mxu0 %v283
        %v285 = vand.u32 %v228, 4294901760
        %286 = vmatpush.msra.mxu0 %v285
        %v287 = vand.u32 %v227, 4294901760
        %288 = vmatpush.msra.mxu0 %v287
        %v289 = vand.u32 %v226, 4294901760
        %290 = vmatpush.msra.mxu0 %v289
        %v291 = vand.u32 %v225, 4294901760
        %292 = vmatpush.msra.mxu0 %v291
        %v293 = vand.u32 %v267, 4294901760
        %v294 = vsub.f32 %v267, %v293
        %v295 = vand.u32 %v294, 4294901760
        %v296 = vsub.f32 %v294, %v295
        %v297 = vand.u32 %v296, 4294901760
        %298 = vmatmul.f32.gmra.mxu0 %v297
        %v299 = vpop.f32.mrf.mxu0
        %v300 = vadd.f32 0.0, %v299
        %301 = vdwg.mxu0
        %302 = vmatpush.msra.mxu0 0.0
        %303 = vmatpush.msra.mxu0 0.0
        %304 = vmatpush.msra.mxu0 0.0
        %305 = vmatpush.msra.mxu0 0.0
        %306 = vmatpush.msra.mxu0 0.0
        %307 = vmatpush.msra.mxu0 0.0
        %308 = vmatpush.msra.mxu0 0.0
        %309 = vmatpush.msra.mxu0 0.0
        %v310 = vand.u32 %v232, 4294901760
        %v311 = vsub.f32 %v232, %v310
        %v312 = vand.u32 %v311, 4294901760
        %v313 = vsub.f32 %v311, %v312
        %v314 = vand.u32 %v313, 4294901760
        %315 = vmatpush.msra.mxu0 %v314
        %v316 = vand.u32 %v231, 4294901760
        %v317 = vsub.f32 %v231, %v316
        %v318 = vand.u32 %v317, 4294901760
        %v319 = vsub.f32 %v317, %v318
        %v320 = vand.u32 %v319, 4294901760
        %321 = vmatpush.msra.mxu0 %v320
        %v322 = vand.u32 %v230, 4294901760
        %v323 = vsub.f32 %v230, %v322
        %v324 = vand.u32 %v323, 4294901760
        %v325 = vsub.f32 %v323, %v324
        %v326 = vand.u32 %v325, 4294901760
        %327 = vmatpush.msra.mxu0 %v326
        %v328 = vand.u32 %v229, 4294901760
        %v329 = vsub.f32 %v229, %v328
        %v330 = vand.u32 %v329, 4294901760
        %v331 = vsub.f32 %v329, %v330
        %v332 = vand.u32 %v331, 4294901760
        %333 = vmatpush.msra.mxu0 %v332
        %v334 = vand.u32 %v228, 4294901760
        %v335 = vsub.f32 %v228, %v334
        %v336 = vand.u32 %v335, 4294901760
        %v337 = vsub.f32 %v335, %v336
        %v338 = vand.u32 %v337, 4294901760
        %339 = vmatpush.msra.mxu0 %v338
        %v340 = vand.u32 %v227, 4294901760
        %v341 = vsub.f32 %v227, %v340
        %v342 = vand.u32 %v341, 4294901760
        %v343 = vsub.f32 %v341, %v342
        %v344 = vand.u32 %v343, 4294901760
        %345 = vmatpush.msra.mxu0 %v344
        %v346 = vand.u32 %v226, 4294901760
        %v347 = vsub.f32 %v226, %v346
        %v348 = vand.u32 %v347, 4294901760
        %v349 = vsub.f32 %v347, %v348
        %v350 = vand.u32 %v349, 4294901760
        %351 = vmatpush.msra.mxu0 %v350
        %v352 = vand.u32 %v225, 4294901760
        %v353 = vsub.f32 %v225, %v352
        %v354 = vand.u32 %v353, 4294901760
        %v355 = vsub.f32 %v353, %v354
        %v356 = vand.u32 %v355, 4294901760
        %357 = vmatpush.msra.mxu0 %v356
        %v358 = vand.u32 %v267, 4294901760
        %359 = vmatmul.f32.gmra.mxu0 %v358
        %v360 = vpop.f32.mrf.mxu0
        %v361 = vadd.f32 %v300, %v360
        %362 = vdwg.mxu0
        %363 = vmatpush.msra.mxu0 0.0
        %364 = vmatpush.msra.mxu0 0.0
        %365 = vmatpush.msra.mxu0 0.0
        %366 = vmatpush.msra.mxu0 0.0
        %367 = vmatpush.msra.mxu0 0.0
        %368 = vmatpush.msra.mxu0 0.0
        %369 = vmatpush.msra.mxu0 0.0
        %370 = vmatpush.msra.mxu0 0.0
        %v371 = vand.u32 %v232, 4294901760
        %v372 = vsub.f32 %v232, %v371
        %373 = vmatpush.msra.mxu0 %v372
        %v374 = vand.u32 %v231, 4294901760
        %v375 = vsub.f32 %v231, %v374
        %376 = vmatpush.msra.mxu0 %v375
        %v377 = vand.u32 %v230, 4294901760
        %v378 = vsub.f32 %v230, %v377
        %379 = vmatpush.msra.mxu0 %v378
        %v380 = vand.u32 %v229, 4294901760
        %v381 = vsub.f32 %v229, %v380
        %382 = vmatpush.msra.mxu0 %v381
        %v383 = vand.u32 %v228, 4294901760
        %v384 = vsub.f32 %v228, %v383
        %385 = vmatpush.msra.mxu0 %v384
        %v386 = vand.u32 %v227, 4294901760
        %v387 = vsub.f32 %v227, %v386
        %388 = vmatpush.msra.mxu0 %v387
        %v389 = vand.u32 %v226, 4294901760
        %v390 = vsub.f32 %v226, %v389
        %391 = vmatpush.msra.mxu0 %v390
        %v392 = vand.u32 %v225, 4294901760
        %v393 = vsub.f32 %v225, %v392
        %394 = vmatpush.msra.mxu0 %v393
        %v395 = vand.u32 %v267, 4294901760
        %v396 = vsub.f32 %v267, %v395
        %397 = vmatmul.f32.gmra.mxu0 %v396
        %v398 = vpop.f32.mrf.mxu0
        %v399 = vadd.f32 %v361, %v398
        %400 = vdwg.mxu0
        %401 = vmatpush.msra.mxu0 0.0
        %402 = vmatpush.msra.mxu0 0.0
        %403 = vmatpush.msra.mxu0 0.0
        %404 = vmatpush.msra.mxu0 0.0
        %405 = vmatpush.msra.mxu0 0.0
        %406 = vmatpush.msra.mxu0 0.0
        %407 = vmatpush.msra.mxu0 0.0
        %408 = vmatpush.msra.mxu0 0.0
        %v409 = vand.u32 %v232, 4294901760
        %410 = vmatpush.msra.mxu0 %v409
        %v411 = vand.u32 %v231, 4294901760
        %412 = vmatpush.msra.mxu0 %v411
        %v413 = vand.u32 %v230, 4294901760
        %414 = vmatpush.msra.mxu0 %v413
        %v415 = vand.u32 %v229, 4294901760
        %416 = vmatpush.msra.mxu0 %v415
        %v417 = vand.u32 %v228, 4294901760
        %418 = vmatpush.msra.mxu0 %v417
        %v419 = vand.u32 %v227, 4294901760
        %420 = vmatpush.msra.mxu0 %v419
        %v421 = vand.u32 %v226, 4294901760
        %422 = vmatpush.msra.mxu0 %v421
        %v423 = vand.u32 %v225, 4294901760
        %424 = vmatpush.msra.mxu0 %v423
        %v425 = vand.u32 %v267, 4294901760
        %v426 = vsub.f32 %v267, %v425
        %v427 = vand.u32 %v426, 4294901760
        %428 = vmatmul.f32.gmra.mxu0 %v427
        %v429 = vpop.f32.mrf.mxu0
        %v430 = vadd.f32 %v399, %v429
        %431 = vdwg.mxu0
        %432 = vmatpush.msra.mxu0 0.0
        %433 = vmatpush.msra.mxu0 0.0
        %434 = vmatpush.msra.mxu0 0.0
        %435 = vmatpush.msra.mxu0 0.0
        %436 = vmatpush.msra.mxu0 0.0
        %437 = vmatpush.msra.mxu0 0.0
        %438 = vmatpush.msra.mxu0 0.0
        %439 = vmatpush.msra.mxu0 0.0
        %v440 = vand.u32 %v232, 4294901760
        %v441 = vsub.f32 %v232, %v440
        %v442 = vand.u32 %v441, 4294901760
        %443 = vmatpush.msra.mxu0 %v442
        %v444 = vand.u32 %v231, 4294901760
        %v445 = vsub.f32 %v231, %v444
        %v446 = vand.u32 %v445, 4294901760
        %447 = vmatpush.msra.mxu0 %v446
        %v448 = vand.u32 %v230, 4294901760
        %v449 = vsub.f32 %v230, %v448
        %v450 = vand.u32 %v449, 4294901760
        %451 = vmatpush.msra.mxu0 %v450
        %v452 = vand.u32 %v229, 4294901760
        %v453 = vsub.f32 %v229, %v452
        %v454 = vand.u32 %v453, 4294901760
        %455 = vmatpush.msra.mxu0 %v454
        %v456 = vand.u32 %v228, 4294901760
        %v457 = vsub.f32 %v228, %v456
        %v458 = vand.u32 %v457, 4294901760
        %459 = vmatpush.msra.mxu0 %v458
        %v460 = vand.u32 %v227, 4294901760
        %v461 = vsub.f32 %v227, %v460
        %v462 = vand.u32 %v461, 4294901760
        %463 = vmatpush.msra.mxu0 %v462
        %v464 = vand.u32 %v226, 4294901760
        %v465 = vsub.f32 %v226, %v464
        %v466 = vand.u32 %v465, 4294901760
        %467 = vmatpush.msra.mxu0 %v466
        %v468 = vand.u32 %v225, 4294901760
        %v469 = vsub.f32 %v225, %v468
        %v470 = vand.u32 %v469, 4294901760
        %471 = vmatpush.msra.mxu0 %v470
        %v472 = vand.u32 %v267, 4294901760
        %473 = vmatmul.f32.gmra.mxu0 %v472
        %v474 = vpop.f32.mrf.mxu0
        %v475 = vadd.f32 %v430, %v474
        %476 = vdwg.mxu0
        %477 = vmatpush.msra.mxu0 0.0
        %478 = vmatpush.msra.mxu0 0.0
        %479 = vmatpush.msra.mxu0 0.0
        %480 = vmatpush.msra.mxu0 0.0
        %481 = vmatpush.msra.mxu0 0.0
        %482 = vmatpush.msra.mxu0 0.0
        %483 = vmatpush.msra.mxu0 0.0
        %484 = vmatpush.msra.mxu0 0.0
        %v485 = vand.u32 %v232, 4294901760
        %486 = vmatpush.msra.mxu0 %v485
        %v487 = vand.u32 %v231, 4294901760
        %488 = vmatpush.msra.mxu0 %v487
        %v489 = vand.u32 %v230, 4294901760
        %490 = vmatpush.msra.mxu0 %v489
        %v491 = vand.u32 %v229, 4294901760
        %492 = vmatpush.msra.mxu0 %v491
        %v493 = vand.u32 %v228, 4294901760
        %494 = vmatpush.msra.mxu0 %v493
        %v495 = vand.u32 %v227, 4294901760
        %496 = vmatpush.msra.mxu0 %v495
        %v497 = vand.u32 %v226, 4294901760
        %498 = vmatpush.msra.mxu0 %v497
        %v499 = vand.u32 %v225, 4294901760
        %500 = vmatpush.msra.mxu0 %v499
        %v501 = vand.u32 %v267, 4294901760
        %502 = vmatmul.f32.gmra.mxu0 %v501
        %v503 = vpop.f32.mrf.mxu0
        %v504 = vadd.f32 %v475, %v503
        %505 = vdwg.mxu0
        %v506 = vld [vmem:[%s2] sm:$0x1]
        %v507 = vld [vmem:[%s3] sm:$0x1]
        %vm508 = vcmask 261120
        %v509 = vsel %vm508, %v504, 0.0
        %510 = vadd.xlane.f32.xlu0 %v509
        %v511 = vpop.xlane.xlu0 %510
        %v512 = vrcp.pop 32.0
        %v513 = vmul.f32 32.0, %v512
        %v514 = vsub.f32 1.0, %v513
        %v515 = vmul.f32 %v512, %v514
        %v516 = vadd.f32 %v512, %v515
        %vm517 = vweird.f32 %v512
        %v518 = vsel %vm517, %v512, %v516
        %v519 = vmul.f32 %v511, %v518
        %v520 = vsub.f32 %v504, %v519
        %v521 = vmul.f32 %v520, %v520
        %v522 = vsel %vm508, %v521, 0.0
        %523 = vadd.xlane.f32.xlu0 %v522
        %v524 = vpop.xlane.xlu0 %523
        %v525 = vmul.f32 %v524, %v518
        %v526 = vadd.f32 %v525, 1e-06
        %v527 = vrsqrt.pop %v526
        %v528 = vmul.f32 %v527, %v526
        %v529 = vmul.f32 %v528, %v527
        %v530 = vmul.f32 0.5, %v529
        %v531 = vsub.f32 1.5, %v530
        %v532 = vmul.f32 %v527, %v531
        %vm533 = vweird.f32 %v526
        %vm534 = vweird.f32 %v527
        %vm535 = vmor %vm533, %vm534
        %v536 = vsel %vm535, %v527, %v532
        %v537 = vmul.f32 %v520, %v536
        %v539 = vperm.slane %v506, 0
        %v541 = vmul.f32 %v537, %v539
        %v543 = vperm.slane %v507, 0
        %v545 = vadd.f32 %v541, %v543
        %546 = vst.msk [vmem:[%s186] sm:$0xff] %vm508, %v545
        %s547 = sand.u32 %s115, 1
        %s548 = scalar_lea.sflag [#allocation3], %s547
        %s549 = sand.u32 %s115, 1
        %s550 = smul.addr %s549, 8
        %s551 = scalar_lea.vmem [#allocation2], %s550
        // Predicated region
        $region37: #{tpu_custom_call.1} parent=35 // pred_check
          %p552 = pneg %p125
        $region38: #{tpu_custom_call.1} parent=35 // pred_check_branch
          %554 = sbr.rel (%p552) target = $region40
        $region39: #{tpu_custom_call.1} parent=35 // pred_region
          %556 = vsyncadd %s548, 0
          %s557 = smul.addr %s18, 8
          %s558 = scalar_lea.hbm %s4, %s557
          %s560 = sshll.u32 %s551, 4
          %s561 = int_to_ptr.vmem [resolvable:$true] %s560
          %s562 = sshll.u32 %s558, 4
          %s563 = int_to_ptr.hbm [resolvable:$true] %s562
          %565 = dma.vmem_to_hbm [thread:$0]  %s561, 128, %s563, %s548
        $region40: #{tpu_custom_call.1} parent=35 // pred_fallthru
          _
      $region36: #{tpu_custom_call.1} parent=5 // pred_fallthru
        _
      %p566 = scmp.le.s32.totalorder 2, %s13
      // Predicated region
      $region41: #{tpu_custom_call.1} parent=5 // pred_check
        %p567 = pneg %p566
      $region42: #{tpu_custom_call.1} parent=5 // pred_check_branch
        %569 = sbr.rel (%p567) target = $region44
      $region43: #{tpu_custom_call.1} parent=5 // pred_region
        %s570 = ssub.s32 %s13, 2
        // Predicated region
        $region45: #{tpu_custom_call.1} parent=43 // pred_check
          %p571 = pneg %p131
        $region46: #{tpu_custom_call.1} parent=43 // pred_check_branch
          %573 = sbr.rel (%p571) target = $region48
        $region47: #{tpu_custom_call.1} parent=43 // pred_region
          %s574 = sand.u32 %s116, 1
          %s575 = scalar_lea.sflag [#allocation3], %s574
          %s576 = sand.u32 %s116, 1
          %s577 = smul.addr %s576, 8
          %s578 = scalar_lea.vmem [#allocation2], %s577
          %580 = dma.done %s575, 128
        $region48: #{tpu_custom_call.1} parent=43 // pred_fallthru
          _
      $region44: #{tpu_custom_call.1} parent=5 // pred_fallthru
        _
    $region6: #{tpu_custom_call.1} parent=1 // loop_footer
      %s17 = sadd.s32 1, %s13
    $region7: #{tpu_custom_call.1} parent=1 // loop_footer_branch
      %12 = sbr.rel target = $region3
    $region8: #{tpu_custom_call.1} parent=1 // loop_exit
      _
    %581 = vsyncpa [#allocation3], 1
    %s582 = scalar_lea.sflag [#allocation3], 1
    %583 = vsyncpa %s582, 1

</llo_original>
